<compile_context>
chip_gen: v6e
topology: v6e:2x2x1
jax: 0.10.0
libtpu: 0.0.40
codegen_flags: <defaults>
</compile_context>

<pallas_src>
import functools

import jax
import jax.numpy as jnp
import numpy as np
from jax.experimental import pallas as pl
from jax.experimental.pallas import tpu as pltpu


def _round_up(x, m):
    return -(-x // m) * m


def _dense_block_kernel(x_ref, w_ref, scale_ref, bias_ref, o_ref, act_ref,
                        *, indim, outdim, num_convs):
    """Fused dense conv block for one batch element.

    x_ref:     (1, indim, L)                 input, NCL layout
    w_ref:     (num_layers, outdim, 3*Cpad)  per-layer im2col weights (zero-padded)
    scale_ref: (num_layers, outdim, 1)       folded BN scale
    bias_ref:  (num_layers, outdim, 1)       folded BN bias
    o_ref:     (1, outdim, L)                output, NCL layout
    act_ref:   VMEM (Cpad, L) f32            resident dense-concat buffer
    """
    L = x_ref.shape[-1]
    pad_in = _round_up(indim, 8)
    pad_out = _round_up(outdim, 8)
    num_layers = num_convs + 1

    # Temporal +/-1 shifts with replicate padding as (L, L) 0/1 matrices, so the shifts run on
    # the MXU instead of lane shuffles: a_shift = a @ R.
    src = jax.lax.broadcasted_iota(jnp.int32, (L, L), 0)   # source position m
    dst = jax.lax.broadcasted_iota(jnp.int32, (L, L), 1)   # destination position l
    r_left = (src == jnp.maximum(dst - 1, 0)).astype(jnp.float32)       # -> a[:, l-1]
    r_right = (src == jnp.minimum(dst + 1, L - 1)).astype(jnp.float32)  # -> a[:, l+1]

    # Zero-init the resident buffer: padded / not-yet-written rows must be exact zeros so the
    # zero-padded weight columns contribute nothing. Then drop the input into rows [0, indim).
    act_ref[...] = jnp.zeros_like(act_ref)
    act_ref[0:indim, :] = x_ref[0].astype(jnp.float32)

    for i in range(num_layers):
        a = act_ref[...]                                                     # (Cpad, L)
        a_lm1 = jnp.dot(a, r_left, preferred_element_type=jnp.float32)      # a at l-1 (replicate)
        a_lp1 = jnp.dot(a, r_right, preferred_element_type=jnp.float32)     # a at l+1 (replicate)
        im2col = jnp.concatenate([a_lm1, a, a_lp1], axis=0)                 # (3*Cpad, L), sublane concat
        acc = jnp.dot(w_ref[i], im2col, preferred_element_type=jnp.float32)  # (outdim, L)
        y = jnp.maximum(acc * scale_ref[i] + bias_ref[i], 0.0)              # BN + ReLU, f32 epilogue
        if i < num_convs:
            r0 = pad_in + i * pad_out          # 8-aligned sublane slot -> clean stores
            act_ref[r0:r0 + outdim, :] = y     # dense concat stays resident in VMEM
        else:
            o_ref[0] = y.astype(o_ref.dtype)


@functools.partial(jax.jit, static_argnames=("indim", "outdim", "num_convs"))
def temporal_dense_conv_layer(x_ncl, w_packed, scale, bias, *, indim, outdim, num_convs):
    """Mirrors TemporalDenseConvLayer.forward (eval mode). x_ncl: (N, indim, L) -> (N, outdim, L)."""
    N, cin, L = x_ncl.shape
    assert cin == indim
    num_layers = num_convs + 1
    pad_in = _round_up(indim, 8)
    pad_out = _round_up(outdim, 8)
    c_pad = pad_in + num_convs * pad_out

    kernel = functools.partial(_dense_block_kernel, indim=indim, outdim=outdim,
                               num_convs=num_convs)
    return pl.pallas_call(
        kernel,
        out_shape=jax.ShapeDtypeStruct((N, outdim, L), x_ncl.dtype),
        grid=(N,),
        in_specs=[
            pl.BlockSpec((1, indim, L), lambda n: (n, 0, 0)),
            pl.BlockSpec((num_layers, outdim, 3 * c_pad), lambda n: (0, 0, 0)),
            pl.BlockSpec((num_layers, outdim, 1), lambda n: (0, 0, 0)),
            pl.BlockSpec((num_layers, outdim, 1), lambda n: (0, 0, 0)),
        ],
        out_specs=pl.BlockSpec((1, outdim, L), lambda n: (n, 0, 0)),
        scratch_shapes=[pltpu.VMEM((c_pad, L), jnp.float32)],
        compiler_params=pltpu.CompilerParams(dimension_semantics=("parallel",)),
    )(x_ncl, w_packed, scale, bias)


def init_params(key, indim, outdim, num_convs=2, eps=1e-5):
    """Deterministic synthetic params. Each layer: (w_pt (Cout,Cin_i,3), bn_scale (Cout,), bn_bias (Cout,))."""
    layers = []
    in_dims = [indim + i * outdim for i in range(num_convs + 1)]
    for cin in in_dims:
        key, kw, kg, kb, km, kv = jax.random.split(key, 6)
        w_pt = jax.random.normal(kw, (outdim, cin, 3), dtype=jnp.float32) * 0.1   # PyTorch Conv1d layout
        gamma = 1.0 + 0.1 * jax.random.normal(kg, (outdim,), dtype=jnp.float32)
        beta = 0.1 * jax.random.normal(kb, (outdim,), dtype=jnp.float32)
        running_mean = 0.1 * jax.random.normal(km, (outdim,), dtype=jnp.float32)
        running_var = jnp.abs(jax.random.normal(kv, (outdim,), dtype=jnp.float32)) + 0.5
        s = gamma / jnp.sqrt(running_var + eps)
        b = beta - running_mean * s
        layers.append((w_pt, s, b))
    return layers


def pack_params(raw_layers, indim, outdim, num_convs):
    """Pack per-layer Conv1d weights into zero-padded im2col matrices that match the kernel's
    padded scratch layout (input slot padded to 8 sublanes, each conv-out slot padded to 8)."""
    pad_in = _round_up(indim, 8)
    pad_out = _round_up(outdim, 8)
    c_pad = pad_in + num_convs * pad_out
    w_list, s_list, b_list = [], [], []
    for (w_pt, s, b) in raw_layers:
        w_np = np.asarray(w_pt, np.float32)            # (Cout, Cin_i, 3)
        cin_i = w_np.shape[1]
        wk = np.zeros((outdim, 3, c_pad), np.float32)  # [o, tap, padded_row]
        # original input channels -> padded rows [0, indim)
        wk[:, :, :indim] = np.transpose(w_np[:, :indim, :], (0, 2, 1))
        # previously produced conv outputs -> their 8-aligned slots
        n_prev = (cin_i - indim) // outdim
        for j in range(n_prev):
            src = w_np[:, indim + j * outdim: indim + (j + 1) * outdim, :]   # (Cout, outdim, 3)
            r0 = pad_in + j * pad_out
            wk[:, :, r0:r0 + outdim] = np.transpose(src, (0, 2, 1))
        w_list.append(wk.reshape(outdim, 3 * c_pad))
        s_list.append(np.asarray(s, np.float32).reshape(outdim, 1))
        b_list.append(np.asarray(b, np.float32).reshape(outdim, 1))
    return (jnp.asarray(np.stack(w_list)),
            jnp.asarray(np.stack(s_list)),
            jnp.asarray(np.stack(b_list)))


def _reference(x_ncl, raw_layers):
    """Pure-JAX mirror of the PyTorch forward (eval-mode BN), replicate pad, NCL layout."""
    def cbr(x, w_pt, scale, bias):
        L = x.shape[-1]
        xp = jnp.pad(x, ((0, 0), (0, 0), (1, 1)), mode="edge")                 # (N, C, L+2)
        taps = jnp.stack([xp[:, :, k:k + L] for k in range(3)], axis=-1)       # (N, C, L, 3)
        y = jnp.einsum("nclk,ock->nol", taps, w_pt,
                       precision=jax.lax.Precision.HIGHEST)
        return jnp.maximum(y * scale[None, :, None] + bias[None, :, None], 0.0)

    x = x_ncl
    for (w, s, b) in raw_layers[:-1]:
        x = jnp.concatenate([x, cbr(x, w, s, b)], axis=1)   # torch.cat(..., dim=1)
    w, s, b = raw_layers[-1]
    return cbr(x, w, s, b)


if __name__ == "__main__":
    batch, indim, outdim, L, num_convs = 2, 4, 8, 16, 2

    key = jax.random.PRNGKey(0)
    kx, kp = jax.random.split(key)
    x = jax.random.normal(kx, (batch, indim, L), dtype=jnp.float32)   # NCL like PyTorch
    raw = init_params(kp, indim, outdim, num_convs)
    w_packed, scale, bias = pack_params(raw, indim, outdim, num_convs)

    out = temporal_dense_conv_layer(x, w_packed, scale, bias,
                                    indim=indim, outdim=outdim, num_convs=num_convs)
    out = jax.block_until_ready(out)

    assert out.shape == (batch, outdim, L), out.shape
    ref = _reference(x, raw)
    np.testing.assert_allclose(np.asarray(out), np.asarray(ref), rtol=1e-4, atol=1e-5)

    print("KERNEL_OK")
</pallas_src>

<mosaic_0001>
module attributes {stable_mosaic.version = 11 : i64} {
  func.func @_dense_block_kernel(%arg0: i32, %arg1: memref<1x4x16xf32, #tpu.memory_space<vmem>>, %arg2: memref<3x8x72xf32, #tpu.memory_space<vmem>>, %arg3: memref<3x8x1xf32, #tpu.memory_space<vmem>>, %arg4: memref<3x8x1xf32, #tpu.memory_space<vmem>>, %arg5: memref<1x8x16xf32, #tpu.memory_space<vmem>>, %arg6: memref<24x16xf32, #tpu.memory_space<vmem>>) attributes {dimension_semantics = [#tpu.dimension_semantics<parallel>], iteration_bounds = array<i64: 2>, scalar_prefetch = 0 : i64, scratch_operands = 1 : i64, tpu.core_type = #tpu.core_type<tc>, window_params = [{transform_indices = @transform_0, window_bounds = array<i64: 1, 4, 16>}, {pipeline_mode = #tpu.pipeline_mode<synchronous>, transform_indices = @transform_1, window_bounds = array<i64: 3, 8, 72>}, {pipeline_mode = #tpu.pipeline_mode<synchronous>, transform_indices = @transform_2, window_bounds = array<i64: 3, 8, 1>}, {pipeline_mode = #tpu.pipeline_mode<synchronous>, transform_indices = @transform_3, window_bounds = array<i64: 3, 8, 1>}, {transform_indices = @transform_4, window_bounds = array<i64: 1, 8, 16>}]} {
    %0 = tpu.iota {dimensions = array<i32: 0>} : vector<16x16xi32>
    %1 = tpu.iota {dimensions = array<i32: 1>} : vector<16x16xi32>
    %c1_i32 = arith.constant 1 : i32
    %2 = vector.broadcast %c1_i32 : i32 to vector<16x16xi32>
    %3 = arith.subi %1, %2 : vector<16x16xi32>
    %c0_i32 = arith.constant 0 : i32
    %4 = vector.broadcast %c0_i32 : i32 to vector<16x16xi32>
    %5 = arith.maxsi %3, %4 : vector<16x16xi32>
    %6 = arith.cmpi eq, %0, %5 : vector<16x16xi32>
    %7 = arith.extui %6 : vector<16x16xi1> to vector<16x16xi32>
    %8 = arith.sitofp %7 : vector<16x16xi32> to vector<16x16xf32>
    %c1_i32_0 = arith.constant 1 : i32
    %9 = vector.broadcast %c1_i32_0 : i32 to vector<16x16xi32>
    %10 = arith.addi %1, %9 : vector<16x16xi32>
    %c15_i32 = arith.constant 15 : i32
    %11 = vector.broadcast %c15_i32 : i32 to vector<16x16xi32>
    %12 = arith.minsi %10, %11 : vector<16x16xi32>
    %13 = arith.cmpi eq, %0, %12 : vector<16x16xi32>
    %14 = arith.extui %13 : vector<16x16xi1> to vector<16x16xi32>
    %15 = arith.sitofp %14 : vector<16x16xi32> to vector<16x16xf32>
    %cst = arith.constant 0.000000e+00 : f32
    %16 = vector.broadcast %cst : f32 to vector<24x16xf32>
    %c0 = arith.constant 0 : index
    %c0_1 = arith.constant 0 : index
    %17 = vector.load %arg6[%c0, %c0_1] : memref<24x16xf32, #tpu.memory_space<vmem>>, vector<24x16xf32>
    tpu.vector_store %arg6[%c0, %c0_1], %16 {strides = array<i32>} : memref<24x16xf32, #tpu.memory_space<vmem>>, vector<24x16xf32>,
    %c0_2 = arith.constant 0 : index
    %c0_3 = arith.constant 0 : index
    %c0_4 = arith.constant 0 : index
    %18 = vector.load %arg1[%c0_2, %c0_3, %c0_4] : memref<1x4x16xf32, #tpu.memory_space<vmem>>, vector<1x4x16xf32>
    %19 = vector.shape_cast %18 : vector<1x4x16xf32> to vector<4x16xf32>
    %c0_5 = arith.constant 0 : index
    %c0_6 = arith.constant 0 : index
    %20 = vector.load %arg6[%c0_5, %c0_6] : memref<24x16xf32, #tpu.memory_space<vmem>>, vector<4x16xf32>
    tpu.vector_store %arg6[%c0_5, %c0_6], %19 {strides = array<i32>} : memref<24x16xf32, #tpu.memory_space<vmem>>, vector<4x16xf32>,
    %c0_7 = arith.constant 0 : index
    %c0_8 = arith.constant 0 : index
    %21 = vector.load %arg6[%c0_7, %c0_8] : memref<24x16xf32, #tpu.memory_space<vmem>>, vector<24x16xf32>
    %cst_9 = arith.constant dense<0.000000e+00> : vector<24x16xf32>
    %22 = tpu.matmul %21, %8, %cst_9 {dimension_numbers = #tpu.dot_dimension_numbers<[1], [0], [0], [1], [0, 0, 1, 1], [], []>} : vector<24x16xf32>, vector<16x16xf32>, vector<24x16xf32> -> vector<24x16xf32>
    %cst_10 = arith.constant dense<0.000000e+00> : vector<24x16xf32>
    %23 = tpu.matmul %21, %15, %cst_10 {dimension_numbers = #tpu.dot_dimension_numbers<[1], [0], [0], [1], [0, 0, 1, 1], [], []>} : vector<24x16xf32>, vector<16x16xf32>, vector<24x16xf32> -> vector<24x16xf32>
    %24 = tpu.concatenate %22, %21, %23 in 0 : vector<24x16xf32>, vector<24x16xf32>, vector<24x16xf32> -> vector<72x16xf32>
    %c0_11 = arith.constant 0 : index
    %c0_12 = arith.constant 0 : index
    %c0_13 = arith.constant 0 : index
    %25 = vector.load %arg2[%c0_11, %c0_12, %c0_13] : memref<3x8x72xf32, #tpu.memory_space<vmem>>, vector<1x8x72xf32>
    %26 = vector.shape_cast %25 : vector<1x8x72xf32> to vector<8x72xf32>
    %cst_14 = arith.constant dense<0.000000e+00> : vector<8x16xf32>
    %27 = tpu.matmul %26, %24, %cst_14 {dimension_numbers = #tpu.dot_dimension_numbers<[1], [0], [0], [1], [0, 0, 1, 1], [], []>} : vector<8x72xf32>, vector<72x16xf32>, vector<8x16xf32> -> vector<8x16xf32>
    %c0_15 = arith.constant 0 : index
    %c0_16 = arith.constant 0 : index
    %c0_17 = arith.constant 0 : index
    %28 = vector.load %arg3[%c0_15, %c0_16, %c0_17] : memref<3x8x1xf32, #tpu.memory_space<vmem>>, vector<1x8x1xf32>
    %29 = vector.shape_cast %28 : vector<1x8x1xf32> to vector<8x1xf32>
    %30 = vector.broadcast %29 : vector<8x1xf32> to vector<8x16xf32>
    %31 = arith.mulf %27, %30 : vector<8x16xf32>
    %c0_18 = arith.constant 0 : index
    %c0_19 = arith.constant 0 : index
    %c0_20 = arith.constant 0 : index
    %32 = vector.load %arg4[%c0_18, %c0_19, %c0_20] : memref<3x8x1xf32, #tpu.memory_space<vmem>>, vector<1x8x1xf32>
    %33 = vector.shape_cast %32 : vector<1x8x1xf32> to vector<8x1xf32>
    %34 = vector.broadcast %33 : vector<8x1xf32> to vector<8x16xf32>
    %35 = arith.addf %31, %34 : vector<8x16xf32>
    %cst_21 = arith.constant 0.000000e+00 : f32
    %36 = vector.broadcast %cst_21 : f32 to vector<8x16xf32>
    %37 = arith.maximumf %35, %36 : vector<8x16xf32>
    %c8 = arith.constant 8 : index
    %c0_22 = arith.constant 0 : index
    %38 = vector.load %arg6[%c8, %c0_22] : memref<24x16xf32, #tpu.memory_space<vmem>>, vector<8x16xf32>
    tpu.vector_store %arg6[%c8, %c0_22], %37 {strides = array<i32>} : memref<24x16xf32, #tpu.memory_space<vmem>>, vector<8x16xf32>,
    %c0_23 = arith.constant 0 : index
    %c0_24 = arith.constant 0 : index
    %39 = vector.load %arg6[%c0_23, %c0_24] : memref<24x16xf32, #tpu.memory_space<vmem>>, vector<24x16xf32>
    %cst_25 = arith.constant dense<0.000000e+00> : vector<24x16xf32>
    %40 = tpu.matmul %39, %8, %cst_25 {dimension_numbers = #tpu.dot_dimension_numbers<[1], [0], [0], [1], [0, 0, 1, 1], [], []>} : vector<24x16xf32>, vector<16x16xf32>, vector<24x16xf32> -> vector<24x16xf32>
    %cst_26 = arith.constant dense<0.000000e+00> : vector<24x16xf32>
    %41 = tpu.matmul %39, %15, %cst_26 {dimension_numbers = #tpu.dot_dimension_numbers<[1], [0], [0], [1], [0, 0, 1, 1], [], []>} : vector<24x16xf32>, vector<16x16xf32>, vector<24x16xf32> -> vector<24x16xf32>
    %42 = tpu.concatenate %40, %39, %41 in 0 : vector<24x16xf32>, vector<24x16xf32>, vector<24x16xf32> -> vector<72x16xf32>
    %c1 = arith.constant 1 : index
    %c0_27 = arith.constant 0 : index
    %c0_28 = arith.constant 0 : index
    %43 = vector.load %arg2[%c1, %c0_27, %c0_28] : memref<3x8x72xf32, #tpu.memory_space<vmem>>, vector<1x8x72xf32>
    %44 = vector.shape_cast %43 : vector<1x8x72xf32> to vector<8x72xf32>
    %cst_29 = arith.constant dense<0.000000e+00> : vector<8x16xf32>
    %45 = tpu.matmul %44, %42, %cst_29 {dimension_numbers = #tpu.dot_dimension_numbers<[1], [0], [0], [1], [0, 0, 1, 1], [], []>} : vector<8x72xf32>, vector<72x16xf32>, vector<8x16xf32> -> vector<8x16xf32>
    %c1_30 = arith.constant 1 : index
    %c0_31 = arith.constant 0 : index
    %c0_32 = arith.constant 0 : index
    %46 = vector.load %arg3[%c1_30, %c0_31, %c0_32] : memref<3x8x1xf32, #tpu.memory_space<vmem>>, vector<1x8x1xf32>
    %47 = vector.shape_cast %46 : vector<1x8x1xf32> to vector<8x1xf32>
    %48 = vector.broadcast %47 : vector<8x1xf32> to vector<8x16xf32>
    %49 = arith.mulf %45, %48 : vector<8x16xf32>
    %c1_33 = arith.constant 1 : index
    %c0_34 = arith.constant 0 : index
    %c0_35 = arith.constant 0 : index
    %50 = vector.load %arg4[%c1_33, %c0_34, %c0_35] : memref<3x8x1xf32, #tpu.memory_space<vmem>>, vector<1x8x1xf32>
    %51 = vector.shape_cast %50 : vector<1x8x1xf32> to vector<8x1xf32>
    %52 = vector.broadcast %51 : vector<8x1xf32> to vector<8x16xf32>
    %53 = arith.addf %49, %52 : vector<8x16xf32>
    %cst_36 = arith.constant 0.000000e+00 : f32
    %54 = vector.broadcast %cst_36 : f32 to vector<8x16xf32>
    %55 = arith.maximumf %53, %54 : vector<8x16xf32>
    %c16 = arith.constant 16 : index
    %c0_37 = arith.constant 0 : index
    %56 = vector.load %arg6[%c16, %c0_37] : memref<24x16xf32, #tpu.memory_space<vmem>>, vector<8x16xf32>
    tpu.vector_store %arg6[%c16, %c0_37], %55 {strides = array<i32>} : memref<24x16xf32, #tpu.memory_space<vmem>>, vector<8x16xf32>,
    %c0_38 = arith.constant 0 : index
    %c0_39 = arith.constant 0 : index
    %57 = vector.load %arg6[%c0_38, %c0_39] : memref<24x16xf32, #tpu.memory_space<vmem>>, vector<24x16xf32>
    %cst_40 = arith.constant dense<0.000000e+00> : vector<24x16xf32>
    %58 = tpu.matmul %57, %8, %cst_40 {dimension_numbers = #tpu.dot_dimension_numbers<[1], [0], [0], [1], [0, 0, 1, 1], [], []>} : vector<24x16xf32>, vector<16x16xf32>, vector<24x16xf32> -> vector<24x16xf32>
    %cst_41 = arith.constant dense<0.000000e+00> : vector<24x16xf32>
    %59 = tpu.matmul %57, %15, %cst_41 {dimension_numbers = #tpu.dot_dimension_numbers<[1], [0], [0], [1], [0, 0, 1, 1], [], []>} : vector<24x16xf32>, vector<16x16xf32>, vector<24x16xf32> -> vector<24x16xf32>
    %60 = tpu.concatenate %58, %57, %59 in 0 : vector<24x16xf32>, vector<24x16xf32>, vector<24x16xf32> -> vector<72x16xf32>
    %c2 = arith.constant 2 : index
    %c0_42 = arith.constant 0 : index
    %c0_43 = arith.constant 0 : index
    %61 = vector.load %arg2[%c2, %c0_42, %c0_43] : memref<3x8x72xf32, #tpu.memory_space<vmem>>, vector<1x8x72xf32>
    %62 = vector.shape_cast %61 : vector<1x8x72xf32> to vector<8x72xf32>
    %cst_44 = arith.constant dense<0.000000e+00> : vector<8x16xf32>
    %63 = tpu.matmul %62, %60, %cst_44 {dimension_numbers = #tpu.dot_dimension_numbers<[1], [0], [0], [1], [0, 0, 1, 1], [], []>} : vector<8x72xf32>, vector<72x16xf32>, vector<8x16xf32> -> vector<8x16xf32>
    %c2_45 = arith.constant 2 : index
    %c0_46 = arith.constant 0 : index
    %c0_47 = arith.constant 0 : index
    %64 = vector.load %arg3[%c2_45, %c0_46, %c0_47] : memref<3x8x1xf32, #tpu.memory_space<vmem>>, vector<1x8x1xf32>
    %65 = vector.shape_cast %64 : vector<1x8x1xf32> to vector<8x1xf32>
    %66 = vector.broadcast %65 : vector<8x1xf32> to vector<8x16xf32>
    %67 = arith.mulf %63, %66 : vector<8x16xf32>
    %c2_48 = arith.constant 2 : index
    %c0_49 = arith.constant 0 : index
    %c0_50 = arith.constant 0 : index
    %68 = vector.load %arg4[%c2_48, %c0_49, %c0_50] : memref<3x8x1xf32, #tpu.memory_space<vmem>>, vector<1x8x1xf32>
    %69 = vector.shape_cast %68 : vector<1x8x1xf32> to vector<8x1xf32>
    %70 = vector.broadcast %69 : vector<8x1xf32> to vector<8x16xf32>
    %71 = arith.addf %67, %70 : vector<8x16xf32>
    %cst_51 = arith.constant 0.000000e+00 : f32
    %72 = vector.broadcast %cst_51 : f32 to vector<8x16xf32>
    %73 = arith.maximumf %71, %72 : vector<8x16xf32>
    %c0_52 = arith.constant 0 : index
    %c0_53 = arith.constant 0 : index
    %c0_54 = arith.constant 0 : index
    %74 = vector.load %arg5[%c0_52, %c0_53, %c0_54] : memref<1x8x16xf32, #tpu.memory_space<vmem>>, vector<1x8x16xf32>
    %75 = vector.shape_cast %74 : vector<1x8x16xf32> to vector<8x16xf32>
    %76 = vector.shape_cast %73 : vector<8x16xf32> to vector<1x8x16xf32>
    tpu.vector_store %arg5[%c0_52, %c0_53, %c0_54], %76 {strides = array<i32>} : memref<1x8x16xf32, #tpu.memory_space<vmem>>, vector<1x8x16xf32>,
    return
  }
  func.func @transform_0(%arg0: i32) -> (i32, i32, i32) {
    %c0_i32 = arith.constant 0 : i32
    %c0_i32_0 = arith.constant 0 : i32
    %c0_i32_1 = arith.constant 0 : i32
    return %arg0, %c0_i32, %c0_i32_0 : i32, i32, i32
  }
  func.func @transform_1(%arg0: i32) -> (i32, i32, i32) {
    %c0_i32 = arith.constant 0 : i32
    %c0_i32_0 = arith.constant 0 : i32
    %c0_i32_1 = arith.constant 0 : i32
    %c0_i32_2 = arith.constant 0 : i32
    return %c0_i32, %c0_i32_0, %c0_i32_1 : i32, i32, i32
  }
  func.func @transform_2(%arg0: i32) -> (i32, i32, i32) {
    %c0_i32 = arith.constant 0 : i32
    %c0_i32_0 = arith.constant 0 : i32
    %c0_i32_1 = arith.constant 0 : i32
    %c0_i32_2 = arith.constant 0 : i32
    return %c0_i32, %c0_i32_0, %c0_i32_1 : i32, i32, i32
  }
  func.func @transform_3(%arg0: i32) -> (i32, i32, i32) {
    %c0_i32 = arith.constant 0 : i32
    %c0_i32_0 = arith.constant 0 : i32
    %c0_i32_1 = arith.constant 0 : i32
    %c0_i32_2 = arith.constant 0 : i32
    return %c0_i32, %c0_i32_0, %c0_i32_1 : i32, i32, i32
  }
  func.func @transform_4(%arg0: i32) -> (i32, i32, i32) {
    %c0_i32 = arith.constant 0 : i32
    %c0_i32_0 = arith.constant 0 : i32
    %c0_i32_1 = arith.constant 0 : i32
    return %arg0, %c0_i32, %c0_i32_0 : i32, i32, i32
  }
}

</mosaic_0001>

<llo_original>
// kernel: temporal_dense_conv_layer.1
$region0: #{temporal_dense_conv_layer.1}
  #allocation0 [shape = 'u32[]', space=smem, size = 0x4, offset = 0x4, fixed_abs, tag = 'smem constant byte address 0x4 - core index']
  #allocation1 [shape = 'u32[144,128]{1,0:T(1,128)}', space=vmem, size = 0x12000, scoped, tag = 'internal scratch']
  #allocation2 [shape = 'f32[24,16]{1,0:T(8,128)}', space=vmem, size = 0x3000, scoped, tag = 'scratch operand']
  %s0 = inlined_call_operand.vmem [shape: f32[2,4,16], index: 0, kind: input, shape index: {}]
  %s1 = inlined_call_operand.vmem [shape: f32[3,8,72], index: 1, kind: input, shape index: {}]
  %s2 = inlined_call_operand.vmem [shape: f32[3,8,1], index: 2, kind: input, shape index: {}]
  %s3 = inlined_call_operand.vmem [shape: f32[3,8,1], index: 3, kind: input, shape index: {}]
  %s4 = inlined_call_operand.hbm [shape: f32[2,8,16], index: 4, kind: output, shape index: {}]
  %s5 = sld [smem:[#allocation0]]
  $region49: #{temporal_dense_conv_layer.1} parent=0
    _
  %s7 = ssub.s32 1, %s5
  %s8 = scalar_select 0, %s7, %s5
  $region1: #{temporal_dense_conv_layer.1} parent=0
    #allocation3 [shape = 'u8[8192]{0}', space=vmem, size = 0x2000, scoped, tag = 'output window, operand 0']
    #allocation4 [shape = 's32[2]{0}', space=sflag, size = 0x8, scoped, tag = 'scoped memory for temporal_dense_conv_layer.1']
    %9 = vsyncpa [#allocation4], 0
    %s10 = scalar_lea.sflag [#allocation4], 1
    %11 = vsyncpa %s10, 0
    loop: start=0, step=1, limit=4
    $region2: #{temporal_dense_conv_layer.1} parent=1 // loop_pre_header
      _
    $region3: #{temporal_dense_conv_layer.1} parent=1 // loop_header
      %s13 = sphi 0, %s17
      %p14 = scmp.ge.s32.totalorder %s13, 4
      %s23 = sphi 0, %s25
      %s26 = sphi 0, %s23
      %s27 = sphi 0, %s26
      %s43 = sphi 0, %s27
      %s47 = sphi 0, %s47
      %s49 = sphi 0, %s47
      %s50 = sphi 0, %s49
      %s64 = sphi 0, %s50
      %s68 = sphi 0, %s68
      %s70 = sphi 0, %s68
      %s71 = sphi 0, %s70
      %s85 = sphi 0, %s71
      %s89 = sphi 0, %s89
      %s91 = sphi 0, %s89
      %s92 = sphi 0, %s91
      %s106 = sphi 0, %s92
      %s112 = sphi 0, %s114
      %s115 = sphi 0, %s112
      %s116 = sphi 0, %s115
      %s132 = sphi 0, %s116
    $region4: #{temporal_dense_conv_layer.1} parent=1 // loop_header_branch
      %16 = sbr.rel (%p14) target = $region8
    $region5: #{temporal_dense_conv_layer.1} parent=1 // loop_body
      %s18 = ssub.s32 %s13, 1
      %s19 = ssub.s32 %s13, 2
      %s20 = sadd.s32 %s13, 1
      %s21 = ssub.s32 %s13, %s20
      %p22 = scmp.eq.s32.totalorder %s21, 0
      %s24 = sadd.s32 %s23, 1
      %s25 = scalar_select %p22, %s23, %s24
      %p28 = pneg %p22
      %p29 = scmp.eq.s32.totalorder %s13, 1
      %p30 = por %p28, %p29
      %p31 = scmp.ne.s32.totalorder %s23, %s26
      %p32 = scmp.eq.s32.totalorder %s13, 0
      %p33 = por %p31, %p32
      %p34 = scmp.ne.s32.totalorder %s23, %s26
      %p35 = scmp.eq.s32.totalorder %s18, 1
      %p36 = por %p34, %p35
      %p37 = scmp.ne.s32.totalorder %s26, %s27
      %p38 = scmp.eq.s32.totalorder %s18, 0
      %p39 = por %p37, %p38
      %p40 = scmp.ne.s32.totalorder %s26, %s27
      %p41 = scmp.eq.s32.totalorder %s19, 1
      %p42 = por %p40, %p41
      %p44 = scmp.ne.s32.totalorder %s27, %s43
      %p45 = scmp.eq.s32.totalorder %s19, 0
      %p46 = por %p44, %p45
      %s48 = sadd.s32 %s47, 1
      %p51 = scmp.eq.s32.totalorder %s13, 1
      %p52 = scmp.ne.s32.totalorder %s47, %s49
      %p53 = scmp.eq.s32.totalorder %s13, 0
      %p54 = por %p52, %p53
      %p55 = scmp.ne.s32.totalorder %s47, %s49
      %p56 = scmp.eq.s32.totalorder %s18, 1
      %p57 = por %p55, %p56
      %p58 = scmp.ne.s32.totalorder %s49, %s50
      %p59 = scmp.eq.s32.totalorder %s18, 0
      %p60 = por %p58, %p59
      %p61 = scmp.ne.s32.totalorder %s49, %s50
      %p62 = scmp.eq.s32.totalorder %s19, 1
      %p63 = por %p61, %p62
      %p65 = scmp.ne.s32.totalorder %s50, %s64
      %p66 = scmp.eq.s32.totalorder %s19, 0
      %p67 = por %p65, %p66
      %s69 = sadd.s32 %s68, 1
      %p72 = scmp.eq.s32.totalorder %s13, 1
      %p73 = scmp.ne.s32.totalorder %s68, %s70
      %p74 = scmp.eq.s32.totalorder %s13, 0
      %p75 = por %p73, %p74
      %p76 = scmp.ne.s32.totalorder %s68, %s70
      %p77 = scmp.eq.s32.totalorder %s18, 1
      %p78 = por %p76, %p77
      %p79 = scmp.ne.s32.totalorder %s70, %s71
      %p80 = scmp.eq.s32.totalorder %s18, 0
      %p81 = por %p79, %p80
      %p82 = scmp.ne.s32.totalorder %s70, %s71
      %p83 = scmp.eq.s32.totalorder %s19, 1
      %p84 = por %p82, %p83
      %p86 = scmp.ne.s32.totalorder %s71, %s85
      %p87 = scmp.eq.s32.totalorder %s19, 0
      %p88 = por %p86, %p87
      %s90 = sadd.s32 %s89, 1
      %p93 = scmp.eq.s32.totalorder %s13, 1
      %p94 = scmp.ne.s32.totalorder %s89, %s91
      %p95 = scmp.eq.s32.totalorder %s13, 0
      %p96 = por %p94, %p95
      %p97 = scmp.ne.s32.totalorder %s89, %s91
      %p98 = scmp.eq.s32.totalorder %s18, 1
      %p99 = por %p97, %p98
      %p100 = scmp.ne.s32.totalorder %s91, %s92
      %p101 = scmp.eq.s32.totalorder %s18, 0
      %p102 = por %p100, %p101
      %p103 = scmp.ne.s32.totalorder %s91, %s92
      %p104 = scmp.eq.s32.totalorder %s19, 1
      %p105 = por %p103, %p104
      %p107 = scmp.ne.s32.totalorder %s92, %s106
      %p108 = scmp.eq.s32.totalorder %s19, 0
      %p109 = por %p107, %p108
      %s110 = ssub.s32 %s13, %s20
      %p111 = scmp.eq.s32.totalorder %s110, 0
      %s113 = sadd.s32 %s112, 1
      %s114 = scalar_select %p111, %s112, %s113
      %p117 = pneg %p111
      %p118 = scmp.eq.s32.totalorder %s13, 1
      %p119 = por %p117, %p118
      %p120 = scmp.ne.s32.totalorder %s112, %s115
      %p121 = scmp.eq.s32.totalorder %s13, 0
      %p122 = por %p120, %p121
      %p123 = scmp.ne.s32.totalorder %s112, %s115
      %p124 = scmp.eq.s32.totalorder %s18, 1
      %p125 = por %p123, %p124
      %p126 = scmp.ne.s32.totalorder %s115, %s116
      %p127 = scmp.eq.s32.totalorder %s18, 0
      %p128 = por %p126, %p127
      %p129 = scmp.ne.s32.totalorder %s115, %s116
      %p130 = scmp.eq.s32.totalorder %s19, 1
      %p131 = por %p129, %p130
      %p133 = scmp.ne.s32.totalorder %s116, %s132
      %p134 = scmp.eq.s32.totalorder %s19, 0
      %p135 = por %p133, %p134
      %p136 = scmp.le.s32.totalorder 1, %s13
      %p137 = scmp.lt.s32.totalorder %s13, 3
      %p138 = pnand %p136, %p137
      %p139 = pneg %p138
      // Predicated region
      $region9: #{temporal_dense_conv_layer.1} parent=5 // pred_check
        _
      $region10: #{temporal_dense_conv_layer.1} parent=5 // pred_check_branch
        %141 = sbr.rel (%p138) target = $region12
      $region11: #{temporal_dense_conv_layer.1} parent=5 // pred_region
        %s142 = ssub.s32 %s13, 1
        // Predicated region
        $region13: #{temporal_dense_conv_layer.1} parent=11 // pred_check
          %p143 = pneg %p60
        $region14: #{temporal_dense_conv_layer.1} parent=11 // pred_check_branch
          %145 = sbr.rel (%p143) target = $region16
        $region15: #{temporal_dense_conv_layer.1} parent=11 // pred_region
          _
        $region16: #{temporal_dense_conv_layer.1} parent=11 // pred_fallthru
          _
        // Predicated region
        $region17: #{temporal_dense_conv_layer.1} parent=11 // pred_check
          %p146 = pneg %p81
        $region18: #{temporal_dense_conv_layer.1} parent=11 // pred_check_branch
          %148 = sbr.rel (%p146) target = $region20
        $region19: #{temporal_dense_conv_layer.1} parent=11 // pred_region
          _
        $region20: #{temporal_dense_conv_layer.1} parent=11 // pred_fallthru
          _
        // Predicated region
        $region21: #{temporal_dense_conv_layer.1} parent=11 // pred_check
          %p149 = pneg %p102
        $region22: #{temporal_dense_conv_layer.1} parent=11 // pred_check_branch
          %151 = sbr.rel (%p149) target = $region24
        $region23: #{temporal_dense_conv_layer.1} parent=11 // pred_region
          _
        $region24: #{temporal_dense_conv_layer.1} parent=11 // pred_fallthru
          _
      $region12: #{temporal_dense_conv_layer.1} parent=5 // pred_fallthru
        _
      %p152 = scmp.lt.s32.totalorder %s13, 2
      // Predicated region
      $region25: #{temporal_dense_conv_layer.1} parent=5 // pred_check
        %p153 = pneg %p152
      $region26: #{temporal_dense_conv_layer.1} parent=5 // pred_check_branch
        %155 = sbr.rel (%p153) target = $region28
      $region27: #{temporal_dense_conv_layer.1} parent=5 // pred_region
        // Predicated region
        $region29: #{temporal_dense_conv_layer.1} parent=27 // pred_check
          %p156 = pneg %p33
        $region30: #{temporal_dense_conv_layer.1} parent=27 // pred_check_branch
          %158 = sbr.rel (%p156) target = $region32
        $region31: #{temporal_dense_conv_layer.1} parent=27 // pred_region
          %p159 = scmp.lt.s32.totalorder %s13, 1
          %s160 = scalar_select %p159, %s13, 1
          %s161 = smul.addr %s160, 4
          %s162 = scalar_lea.vmem %s0, %s161
        $region32: #{temporal_dense_conv_layer.1} parent=27 // pred_fallthru
          _
      $region28: #{temporal_dense_conv_layer.1} parent=5 // pred_fallthru
        _
      %p163 = scmp.le.s32.totalorder 1, %s13
      %p164 = scmp.lt.s32.totalorder %s13, 3
      %p165 = pnand %p163, %p164
      %p166 = pneg %p165
      // Predicated region
      $region33: #{temporal_dense_conv_layer.1} parent=5 // pred_check
        _
      $region34: #{temporal_dense_conv_layer.1} parent=5 // pred_check_branch
        %168 = sbr.rel (%p165) target = $region36
      $region35: #{temporal_dense_conv_layer.1} parent=5 // pred_region
        %s169 = ssub.s32 %s13, 1
        %p170 = scmp.lt.s32.totalorder %s18, 1
        %s171 = scalar_select %p170, %s18, 1
        %s172 = smul.addr %s171, 4
        %s173 = scalar_lea.vmem %s0, %s172
        %p174 = pneg %p39
        %p175 = pneg %p36
        %p176 = pneg %p60
        %p177 = pneg %p57
        %p178 = pneg %p81
        %p179 = pneg %p78
        %p180 = pneg %p102
        %p181 = pneg %p99
        %p182 = pneg %p128
        %p183 = pneg %p125
        %s184 = sand.u32 %s115, 1
        %s185 = scalar_lea.sflag [#allocation4], %s184
        %s186 = sand.u32 %s115, 1
        %s187 = smul.addr %s186, 8
        %s188 = scalar_lea.vmem [#allocation3], %s187
        %p189 = scmp.lt.s32.totalorder %s18, 1
        %s190 = scalar_select %p189, %s18, 1
        %s191 = smul.addr %s190, 4
        %s192 = scalar_lea.vmem %s0, %s191
        %v193 = vlaneseq
        %v194 = vshrl.u32 %v193, 7
        %v195 = vadd.s32 %v194, 8
        %v196 = vlaneseq
        %v197 = vand.u32 %v196, 127
        %v198 = vsub.s32 %v197, 1
        %vm199 = vcmp.gt.s32.totalorder %v198, 0
        %v200 = vsel %vm199, %v198, 0
        %vm201 = vcmp.eq.s32.totalorder %v194, %v200
        %vm202 = vcmp.eq.s32.totalorder %v195, %v200
        %v203 = vsel %vm201, 1, 0
        %v204 = vsel %vm202, 1, 0
        %v205 = vcvt.s32.f32 %v203
        %v206 = vcvt.s32.f32 %v204
        %v207 = vadd.s32 %v197, 1
        %vm208 = vcmp.lt.s32.totalorder %v207, 15
        %v209 = vsel %vm208, %v207, 15
        %vm210 = vcmp.eq.s32.totalorder %v194, %v209
        %vm211 = vcmp.eq.s32.totalorder %v195, %v209
        %v212 = vsel %vm210, 1, 0
        %v213 = vsel %vm211, 1, 0
        %v214 = vcvt.s32.f32 %v212
        %v215 = vcvt.s32.f32 %v213
        %vm216 = vcmask 130048
        %217 = vst.msk [vmem:[#allocation2] sm:$0xff] %vm216, 0.0
        %218 = vst.msk [vmem:[#allocation2 + $0x8] sm:$0xff] %vm216, 0.0
        %219 = vst.msk [vmem:[#allocation2 + $0x10] sm:$0xff] %vm216, 0.0
        %v220 = vld [vmem:[%s192] sm:$0xf]
        %vm221 = vcmask 125952
        %222 = vst.msk [vmem:[#allocation2] sm:$0xf] %vm221, %v220
        %v223 = vld [vmem:[#allocation2] sm:$0xff]
        %v224 = vld [vmem:[#allocation2 + $0x8] sm:$0xff]
        %v225 = vld [vmem:[#allocation2 + $0x10] sm:$0xff]
        %v227 = vsel %vm216, %v223, 0
        %v230 = vsel %vm216, %v224, 0
        %v233 = vsel %vm216, %v225, 0
        %235 = vmatprep.subr.mxu0 0.0
        %236 = vmatpush1.msra.mxu0 0.0
        %237 = vmatprep.subr.mxu0 0.0
        %238 = vmatpush1.msra.mxu0 0.0
        %239 = vmatprep.subr.mxu0 0.0
        %240 = vmatpush1.msra.mxu0 0.0
        %241 = vmatprep.subr.mxu0 0.0
        %242 = vmatpush1.msra.mxu0 0.0
        %243 = vmatprep.subr.mxu0 0.0
        %244 = vmatpush1.msra.mxu0 0.0
        %245 = vmatprep.subr.mxu0 0.0
        %246 = vmatpush1.msra.mxu0 0.0
        %247 = vmatprep.subr.mxu0 0.0
        %248 = vmatpush1.msra.mxu0 0.0
        %249 = vmatprep.subr.mxu0 0.0
        %250 = vmatpush1.msra.mxu0 0.0
        %251 = vmatprep.subr.mxu0 0.0
        %252 = vmatpush1.msra.mxu0 0.0
        %253 = vmatprep.subr.mxu0 0.0
        %254 = vmatpush1.msra.mxu0 0.0
        %255 = vmatprep.subr.mxu0 0.0
        %256 = vmatpush1.msra.mxu0 0.0
        %257 = vmatprep.subr.mxu0 0.0
        %258 = vmatpush1.msra.mxu0 0.0
        %259 = vmatprep.subr.mxu0 0.0
        %260 = vmatpush1.msra.mxu0 0.0
        %261 = vmatprep.subr.mxu0 0.0
        %262 = vmatpush1.msra.mxu0 0.0
        %263 = vmatprep.subr.mxu0 0.0
        %264 = vmatpush1.msra.mxu0 %v206
        %265 = vmatprep.subr.mxu0 0.0
        %266 = vmatpush1.msra.mxu0 %v205
        %267 = vmatprep.subr.mxu0 0.0
        %268 = vmatpush2.msra.mxu0 0.0
        %269 = vmatprep.subr.mxu0 0.0
        %270 = vmatpush2.msra.mxu0 0.0
        %271 = vmatprep.subr.mxu0 0.0
        %272 = vmatpush2.msra.mxu0 0.0
        %273 = vmatprep.subr.mxu0 0.0
        %274 = vmatpush2.msra.mxu0 0.0
        %275 = vmatprep.subr.mxu0 0.0
        %276 = vmatpush2.msra.mxu0 0.0
        %277 = vmatprep.subr.mxu0 0.0
        %278 = vmatpush2.msra.mxu0 0.0
        %279 = vmatprep.subr.mxu0 0.0
        %280 = vmatpush2.msra.mxu0 0.0
        %281 = vmatprep.subr.mxu0 0.0
        %282 = vmatpush2.msra.mxu0 0.0
        %283 = vmatprep.subr.mxu0 0.0
        %284 = vmatpush2.msra.mxu0 0.0
        %285 = vmatprep.subr.mxu0 0.0
        %286 = vmatpush2.msra.mxu0 0.0
        %287 = vmatprep.subr.mxu0 0.0
        %288 = vmatpush2.msra.mxu0 0.0
        %289 = vmatprep.subr.mxu0 0.0
        %290 = vmatpush2.msra.mxu0 0.0
        %291 = vmatprep.subr.mxu0 0.0
        %292 = vmatpush2.msra.mxu0 0.0
        %293 = vmatprep.subr.mxu0 0.0
        %294 = vmatpush2.msra.mxu0 0.0
        %295 = vmatprep.subr.mxu0 0.0
        %296 = vmatpush2.msra.mxu0 0.0
        %297 = vmatprep.subr.mxu0 0.0
        %298 = vmatpush2.msra.mxu0 0.0
        %299 = vmatprep.mubr.f32.mxu0 0.0
        %300 = vmatmul.mubr.f32.gmra.mxu0 %v227
        %v301 = vpop.f32.mrf.mxu0
        %v302 = vadd.f32 0.0, %v301
        %v303 = vpop.f32.mrf.mxu0
        %304 = vmatprep.mubr.f32.mxu0 0.0
        %305 = vmatmul.mubr.f32.gmra.mxu0 %v230
        %v306 = vpop.f32.mrf.mxu0
        %v307 = vadd.f32 0.0, %v306
        %v308 = vpop.f32.mrf.mxu0
        %309 = vmatprep.mubr.f32.mxu0 0.0
        %310 = vmatmul.mubr.f32.gmra.mxu0 %v233
        %v311 = vpop.f32.mrf.mxu0
        %v312 = vadd.f32 0.0, %v311
        %v313 = vpop.f32.mrf.mxu0
        %314 = vdwg.mxu0
        %315 = vmatprep.subr.mxu0 0.0
        %316 = vmatpush1.msra.mxu0 0.0
        %317 = vmatprep.subr.mxu0 0.0
        %318 = vmatpush1.msra.mxu0 0.0
        %319 = vmatprep.subr.mxu0 0.0
        %320 = vmatpush1.msra.mxu0 0.0
        %321 = vmatprep.subr.mxu0 0.0
        %322 = vmatpush1.msra.mxu0 0.0
        %323 = vmatprep.subr.mxu0 0.0
        %324 = vmatpush1.msra.mxu0 0.0
        %325 = vmatprep.subr.mxu0 0.0
        %326 = vmatpush1.msra.mxu0 0.0
        %327 = vmatprep.subr.mxu0 0.0
        %328 = vmatpush1.msra.mxu0 0.0
        %329 = vmatprep.subr.mxu0 0.0
        %330 = vmatpush1.msra.mxu0 0.0
        %331 = vmatprep.subr.mxu0 0.0
        %332 = vmatpush1.msra.mxu0 0.0
        %333 = vmatprep.subr.mxu0 0.0
        %334 = vmatpush1.msra.mxu0 0.0
        %335 = vmatprep.subr.mxu0 0.0
        %336 = vmatpush1.msra.mxu0 0.0
        %337 = vmatprep.subr.mxu0 0.0
        %338 = vmatpush1.msra.mxu0 0.0
        %339 = vmatprep.subr.mxu0 0.0
        %340 = vmatpush1.msra.mxu0 0.0
        %341 = vmatprep.subr.mxu0 0.0
        %342 = vmatpush1.msra.mxu0 0.0
        %343 = vmatprep.subr.mxu0 0.0
        %344 = vmatpush1.msra.mxu0 %v215
        %345 = vmatprep.subr.mxu0 0.0
        %346 = vmatpush1.msra.mxu0 %v214
        %347 = vmatprep.subr.mxu0 0.0
        %348 = vmatpush2.msra.mxu0 0.0
        %349 = vmatprep.subr.mxu0 0.0
        %350 = vmatpush2.msra.mxu0 0.0
        %351 = vmatprep.subr.mxu0 0.0
        %352 = vmatpush2.msra.mxu0 0.0
        %353 = vmatprep.subr.mxu0 0.0
        %354 = vmatpush2.msra.mxu0 0.0
        %355 = vmatprep.subr.mxu0 0.0
        %356 = vmatpush2.msra.mxu0 0.0
        %357 = vmatprep.subr.mxu0 0.0
        %358 = vmatpush2.msra.mxu0 0.0
        %359 = vmatprep.subr.mxu0 0.0
        %360 = vmatpush2.msra.mxu0 0.0
        %361 = vmatprep.subr.mxu0 0.0
        %362 = vmatpush2.msra.mxu0 0.0
        %363 = vmatprep.subr.mxu0 0.0
        %364 = vmatpush2.msra.mxu0 0.0
        %365 = vmatprep.subr.mxu0 0.0
        %366 = vmatpush2.msra.mxu0 0.0
        %367 = vmatprep.subr.mxu0 0.0
        %368 = vmatpush2.msra.mxu0 0.0
        %369 = vmatprep.subr.mxu0 0.0
        %370 = vmatpush2.msra.mxu0 0.0
        %371 = vmatprep.subr.mxu0 0.0
        %372 = vmatpush2.msra.mxu0 0.0
        %373 = vmatprep.subr.mxu0 0.0
        %374 = vmatpush2.msra.mxu0 0.0
        %375 = vmatprep.subr.mxu0 0.0
        %376 = vmatpush2.msra.mxu0 0.0
        %377 = vmatprep.subr.mxu0 0.0
        %378 = vmatpush2.msra.mxu0 0.0
        %379 = vmatprep.mubr.f32.mxu0 0.0
        %380 = vmatmul.mubr.f32.gmra.mxu0 %v227
        %v381 = vpop.f32.mrf.mxu0
        %v382 = vadd.f32 0.0, %v381
        %v383 = vpop.f32.mrf.mxu0
        %384 = vmatprep.mubr.f32.mxu0 0.0
        %385 = vmatmul.mubr.f32.gmra.mxu0 %v230
        %v386 = vpop.f32.mrf.mxu0
        %v387 = vadd.f32 0.0, %v386
        %v388 = vpop.f32.mrf.mxu0
        %389 = vmatprep.mubr.f32.mxu0 0.0
        %390 = vmatmul.mubr.f32.gmra.mxu0 %v233
        %v391 = vpop.f32.mrf.mxu0
        %v392 = vadd.f32 0.0, %v391
        %v393 = vpop.f32.mrf.mxu0
        %394 = vdwg.mxu0
        %v395 = vld [vmem:[%s1] sm:$0xff]
        %vm396 = vcmask 588800
        %v398 = vsel %vm396, %v395, 0
        %400 = vmatprep.subr.mxu0 0.0
        %401 = vmatpush1.msra.mxu0 0.0
        %402 = vmatprep.subr.mxu0 0.0
        %403 = vmatpush1.msra.mxu0 0.0
        %404 = vmatprep.subr.mxu0 0.0
        %405 = vmatpush1.msra.mxu0 0.0
        %406 = vmatprep.subr.mxu0 0.0
        %407 = vmatpush1.msra.mxu0 0.0
        %408 = vmatprep.subr.mxu0 0.0
        %409 = vmatpush1.msra.mxu0 0.0
        %410 = vmatprep.subr.mxu0 0.0
        %411 = vmatpush1.msra.mxu0 0.0
        %412 = vmatprep.subr.mxu0 0.0
        %413 = vmatpush1.msra.mxu0 0.0
        %414 = vmatprep.subr.mxu0 0.0
        %415 = vmatpush1.msra.mxu0 %v392
        %416 = vmatprep.subr.mxu0 0.0
        %417 = vmatpush1.msra.mxu0 %v387
        %418 = vmatprep.subr.mxu0 0.0
        %419 = vmatpush1.msra.mxu0 %v382
        %420 = vmatprep.subr.mxu0 0.0
        %421 = vmatpush1.msra.mxu0 %v225
        %422 = vmatprep.subr.mxu0 0.0
        %423 = vmatpush1.msra.mxu0 %v224
        %424 = vmatprep.subr.mxu0 0.0
        %425 = vmatpush1.msra.mxu0 %v223
        %426 = vmatprep.subr.mxu0 0.0
        %427 = vmatpush1.msra.mxu0 %v312
        %428 = vmatprep.subr.mxu0 0.0
        %429 = vmatpush1.msra.mxu0 %v307
        %430 = vmatprep.subr.mxu0 0.0
        %431 = vmatpush1.msra.mxu0 %v302
        %432 = vmatprep.subr.mxu0 0.0
        %433 = vmatpush2.msra.mxu0 0.0
        %434 = vmatprep.subr.mxu0 0.0
        %435 = vmatpush2.msra.mxu0 0.0
        %436 = vmatprep.subr.mxu0 0.0
        %437 = vmatpush2.msra.mxu0 0.0
        %438 = vmatprep.subr.mxu0 0.0
        %439 = vmatpush2.msra.mxu0 0.0
        %440 = vmatprep.subr.mxu0 0.0
        %441 = vmatpush2.msra.mxu0 0.0
        %442 = vmatprep.subr.mxu0 0.0
        %443 = vmatpush2.msra.mxu0 0.0
        %444 = vmatprep.subr.mxu0 0.0
        %445 = vmatpush2.msra.mxu0 0.0
        %446 = vmatprep.subr.mxu0 0.0
        %447 = vmatpush2.msra.mxu0 0.0
        %448 = vmatprep.subr.mxu0 0.0
        %449 = vmatpush2.msra.mxu0 0.0
        %450 = vmatprep.subr.mxu0 0.0
        %451 = vmatpush2.msra.mxu0 0.0
        %452 = vmatprep.subr.mxu0 0.0
        %453 = vmatpush2.msra.mxu0 0.0
        %454 = vmatprep.subr.mxu0 0.0
        %455 = vmatpush2.msra.mxu0 0.0
        %456 = vmatprep.subr.mxu0 0.0
        %457 = vmatpush2.msra.mxu0 0.0
        %458 = vmatprep.subr.mxu0 0.0
        %459 = vmatpush2.msra.mxu0 0.0
        %460 = vmatprep.subr.mxu0 0.0
        %461 = vmatpush2.msra.mxu0 0.0
        %462 = vmatprep.subr.mxu0 0.0
        %463 = vmatpush2.msra.mxu0 0.0
        %464 = vmatprep.mubr.f32.mxu0 0.0
        %465 = vmatmul.mubr.f32.gmra.mxu0 %v398
        %v466 = vpop.f32.mrf.mxu0
        %v467 = vadd.f32 0.0, %v466
        %v468 = vpop.f32.mrf.mxu0
        %469 = vdwg.mxu0
        %v470 = vld [vmem:[%s2] sm:$0xff]
        %472 = vset.pattern.permute.xlu0 0
        %473 = vperm.xlu0 %472, %v470
        %v474 = vpop.permute.xlu0 %473
        %v476 = vmul.f32 %v467, %v474
        %v477 = vld [vmem:[%s3] sm:$0xff]
        %479 = vset.pattern.permute.xlu0 0
        %480 = vperm.xlu0 %479, %v477
        %v481 = vpop.permute.xlu0 %480
        %v483 = vadd.f32 %v476, %v481
        %v484 = vmax.f32 %v483, 0.0
        %485 = vst.msk [vmem:[#allocation2 + $0x8] sm:$0xff] %vm216, %v484
        %v486 = vld [vmem:[#allocation2] sm:$0xff]
        %v487 = vld [vmem:[#allocation2 + $0x8] sm:$0xff]
        %v488 = vld [vmem:[#allocation2 + $0x10] sm:$0xff]
        %v490 = vsel %vm216, %v486, 0
        %v493 = vsel %vm216, %v487, 0
        %v496 = vsel %vm216, %v488, 0
        %498 = vmatprep.subr.mxu0 0.0
        %499 = vmatpush1.msra.mxu0 0.0
        %500 = vmatprep.subr.mxu0 0.0
        %501 = vmatpush1.msra.mxu0 0.0
        %502 = vmatprep.subr.mxu0 0.0
        %503 = vmatpush1.msra.mxu0 0.0
        %504 = vmatprep.subr.mxu0 0.0
        %505 = vmatpush1.msra.mxu0 0.0
        %506 = vmatprep.subr.mxu0 0.0
        %507 = vmatpush1.msra.mxu0 0.0
        %508 = vmatprep.subr.mxu0 0.0
        %509 = vmatpush1.msra.mxu0 0.0
        %510 = vmatprep.subr.mxu0 0.0
        %511 = vmatpush1.msra.mxu0 0.0
        %512 = vmatprep.subr.mxu0 0.0
        %513 = vmatpush1.msra.mxu0 0.0
        %514 = vmatprep.subr.mxu0 0.0
        %515 = vmatpush1.msra.mxu0 0.0
        %516 = vmatprep.subr.mxu0 0.0
        %517 = vmatpush1.msra.mxu0 0.0
        %518 = vmatprep.subr.mxu0 0.0
        %519 = vmatpush1.msra.mxu0 0.0
        %520 = vmatprep.subr.mxu0 0.0
        %521 = vmatpush1.msra.mxu0 0.0
        %522 = vmatprep.subr.mxu0 0.0
        %523 = vmatpush1.msra.mxu0 0.0
        %524 = vmatprep.subr.mxu0 0.0
        %525 = vmatpush1.msra.mxu0 0.0
        %526 = vmatprep.subr.mxu0 0.0
        %527 = vmatpush1.msra.mxu0 %v206
        %528 = vmatprep.subr.mxu0 0.0
        %529 = vmatpush1.msra.mxu0 %v205
        %530 = vmatprep.subr.mxu0 0.0
        %531 = vmatpush2.msra.mxu0 0.0
        %532 = vmatprep.subr.mxu0 0.0
        %533 = vmatpush2.msra.mxu0 0.0
        %534 = vmatprep.subr.mxu0 0.0
        %535 = vmatpush2.msra.mxu0 0.0
        %536 = vmatprep.subr.mxu0 0.0
        %537 = vmatpush2.msra.mxu0 0.0
        %538 = vmatprep.subr.mxu0 0.0
        %539 = vmatpush2.msra.mxu0 0.0
        %540 = vmatprep.subr.mxu0 0.0
        %541 = vmatpush2.msra.mxu0 0.0
        %542 = vmatprep.subr.mxu0 0.0
        %543 = vmatpush2.msra.mxu0 0.0
        %544 = vmatprep.subr.mxu0 0.0
        %545 = vmatpush2.msra.mxu0 0.0
        %546 = vmatprep.subr.mxu0 0.0
        %547 = vmatpush2.msra.mxu0 0.0
        %548 = vmatprep.subr.mxu0 0.0
        %549 = vmatpush2.msra.mxu0 0.0
        %550 = vmatprep.subr.mxu0 0.0
        %551 = vmatpush2.msra.mxu0 0.0
        %552 = vmatprep.subr.mxu0 0.0
        %553 = vmatpush2.msra.mxu0 0.0
        %554 = vmatprep.subr.mxu0 0.0
        %555 = vmatpush2.msra.mxu0 0.0
        %556 = vmatprep.subr.mxu0 0.0
        %557 = vmatpush2.msra.mxu0 0.0
        %558 = vmatprep.subr.mxu0 0.0
        %559 = vmatpush2.msra.mxu0 0.0
        %560 = vmatprep.subr.mxu0 0.0
        %561 = vmatpush2.msra.mxu0 0.0
        %562 = vmatprep.mubr.f32.mxu0 0.0
        %563 = vmatmul.mubr.f32.gmra.mxu0 %v490
        %v564 = vpop.f32.mrf.mxu0
        %v565 = vadd.f32 0.0, %v564
        %v566 = vpop.f32.mrf.mxu0
        %567 = vmatprep.mubr.f32.mxu0 0.0
        %568 = vmatmul.mubr.f32.gmra.mxu0 %v493
        %v569 = vpop.f32.mrf.mxu0
        %v570 = vadd.f32 0.0, %v569
        %v571 = vpop.f32.mrf.mxu0
        %572 = vmatprep.mubr.f32.mxu0 0.0
        %573 = vmatmul.mubr.f32.gmra.mxu0 %v496
        %v574 = vpop.f32.mrf.mxu0
        %v575 = vadd.f32 0.0, %v574
        %v576 = vpop.f32.mrf.mxu0
        %577 = vdwg.mxu0
        %578 = vmatprep.subr.mxu0 0.0
        %579 = vmatpush1.msra.mxu0 0.0
        %580 = vmatprep.subr.mxu0 0.0
        %581 = vmatpush1.msra.mxu0 0.0
        %582 = vmatprep.subr.mxu0 0.0
        %583 = vmatpush1.msra.mxu0 0.0
        %584 = vmatprep.subr.mxu0 0.0
        %585 = vmatpush1.msra.mxu0 0.0
        %586 = vmatprep.subr.mxu0 0.0
        %587 = vmatpush1.msra.mxu0 0.0
        %588 = vmatprep.subr.mxu0 0.0
        %589 = vmatpush1.msra.mxu0 0.0
        %590 = vmatprep.subr.mxu0 0.0
        %591 = vmatpush1.msra.mxu0 0.0
        %592 = vmatprep.subr.mxu0 0.0
        %593 = vmatpush1.msra.mxu0 0.0
        %594 = vmatprep.subr.mxu0 0.0
        %595 = vmatpush1.msra.mxu0 0.0
        %596 = vmatprep.subr.mxu0 0.0
        %597 = vmatpush1.msra.mxu0 0.0
        %598 = vmatprep.subr.mxu0 0.0
        %599 = vmatpush1.msra.mxu0 0.0
        %600 = vmatprep.subr.mxu0 0.0
        %601 = vmatpush1.msra.mxu0 0.0
        %602 = vmatprep.subr.mxu0 0.0
        %603 = vmatpush1.msra.mxu0 0.0
        %604 = vmatprep.subr.mxu0 0.0
        %605 = vmatpush1.msra.mxu0 0.0
        %606 = vmatprep.subr.mxu0 0.0
        %607 = vmatpush1.msra.mxu0 %v215
        %608 = vmatprep.subr.mxu0 0.0
        %609 = vmatpush1.msra.mxu0 %v214
        %610 = vmatprep.subr.mxu0 0.0
        %611 = vmatpush2.msra.mxu0 0.0
        %612 = vmatprep.subr.mxu0 0.0
        %613 = vmatpush2.msra.mxu0 0.0
        %614 = vmatprep.subr.mxu0 0.0
        %615 = vmatpush2.msra.mxu0 0.0
        %616 = vmatprep.subr.mxu0 0.0
        %617 = vmatpush2.msra.mxu0 0.0
        %618 = vmatprep.subr.mxu0 0.0
        %619 = vmatpush2.msra.mxu0 0.0
        %620 = vmatprep.subr.mxu0 0.0
        %621 = vmatpush2.msra.mxu0 0.0
        %622 = vmatprep.subr.mxu0 0.0
        %623 = vmatpush2.msra.mxu0 0.0
        %624 = vmatprep.subr.mxu0 0.0
        %625 = vmatpush2.msra.mxu0 0.0
        %626 = vmatprep.subr.mxu0 0.0
        %627 = vmatpush2.msra.mxu0 0.0
        %628 = vmatprep.subr.mxu0 0.0
        %629 = vmatpush2.msra.mxu0 0.0
        %630 = vmatprep.subr.mxu0 0.0
        %631 = vmatpush2.msra.mxu0 0.0
        %632 = vmatprep.subr.mxu0 0.0
        %633 = vmatpush2.msra.mxu0 0.0
        %634 = vmatprep.subr.mxu0 0.0
        %635 = vmatpush2.msra.mxu0 0.0
        %636 = vmatprep.subr.mxu0 0.0
        %637 = vmatpush2.msra.mxu0 0.0
        %638 = vmatprep.subr.mxu0 0.0
        %639 = vmatpush2.msra.mxu0 0.0
        %640 = vmatprep.subr.mxu0 0.0
        %641 = vmatpush2.msra.mxu0 0.0
        %642 = vmatprep.mubr.f32.mxu0 0.0
        %643 = vmatmul.mubr.f32.gmra.mxu0 %v490
        %v644 = vpop.f32.mrf.mxu0
        %v645 = vadd.f32 0.0, %v644
        %v646 = vpop.f32.mrf.mxu0
        %647 = vmatprep.mubr.f32.mxu0 0.0
        %648 = vmatmul.mubr.f32.gmra.mxu0 %v493
        %v649 = vpop.f32.mrf.mxu0
        %v650 = vadd.f32 0.0, %v649
        %v651 = vpop.f32.mrf.mxu0
        %652 = vmatprep.mubr.f32.mxu0 0.0
        %653 = vmatmul.mubr.f32.gmra.mxu0 %v496
        %v654 = vpop.f32.mrf.mxu0
        %v655 = vadd.f32 0.0, %v654
        %v656 = vpop.f32.mrf.mxu0
        %657 = vdwg.mxu0
        %s658 = scalar_lea.vmem %s1, 8
        %v659 = vld [vmem:[%s658] sm:$0xff]
        %v661 = vsel %vm396, %v659, 0
        %663 = vmatprep.subr.mxu0 0.0
        %664 = vmatpush1.msra.mxu0 0.0
        %665 = vmatprep.subr.mxu0 0.0
        %666 = vmatpush1.msra.mxu0 0.0
        %667 = vmatprep.subr.mxu0 0.0
        %668 = vmatpush1.msra.mxu0 0.0
        %669 = vmatprep.subr.mxu0 0.0
        %670 = vmatpush1.msra.mxu0 0.0
        %671 = vmatprep.subr.mxu0 0.0
        %672 = vmatpush1.msra.mxu0 0.0
        %673 = vmatprep.subr.mxu0 0.0
        %674 = vmatpush1.msra.mxu0 0.0
        %675 = vmatprep.subr.mxu0 0.0
        %676 = vmatpush1.msra.mxu0 0.0
        %677 = vmatprep.subr.mxu0 0.0
        %678 = vmatpush1.msra.mxu0 %v655
        %679 = vmatprep.subr.mxu0 0.0
        %680 = vmatpush1.msra.mxu0 %v650
        %681 = vmatprep.subr.mxu0 0.0
        %682 = vmatpush1.msra.mxu0 %v645
        %683 = vmatprep.subr.mxu0 0.0
        %684 = vmatpush1.msra.mxu0 %v488
        %685 = vmatprep.subr.mxu0 0.0
        %686 = vmatpush1.msra.mxu0 %v487
        %687 = vmatprep.subr.mxu0 0.0
        %688 = vmatpush1.msra.mxu0 %v486
        %689 = vmatprep.subr.mxu0 0.0
        %690 = vmatpush1.msra.mxu0 %v575
        %691 = vmatprep.subr.mxu0 0.0
        %692 = vmatpush1.msra.mxu0 %v570
        %693 = vmatprep.subr.mxu0 0.0
        %694 = vmatpush1.msra.mxu0 %v565
        %695 = vmatprep.subr.mxu0 0.0
        %696 = vmatpush2.msra.mxu0 0.0
        %697 = vmatprep.subr.mxu0 0.0
        %698 = vmatpush2.msra.mxu0 0.0
        %699 = vmatprep.subr.mxu0 0.0
        %700 = vmatpush2.msra.mxu0 0.0
        %701 = vmatprep.subr.mxu0 0.0
        %702 = vmatpush2.msra.mxu0 0.0
        %703 = vmatprep.subr.mxu0 0.0
        %704 = vmatpush2.msra.mxu0 0.0
        %705 = vmatprep.subr.mxu0 0.0
        %706 = vmatpush2.msra.mxu0 0.0
        %707 = vmatprep.subr.mxu0 0.0
        %708 = vmatpush2.msra.mxu0 0.0
        %709 = vmatprep.subr.mxu0 0.0
        %710 = vmatpush2.msra.mxu0 0.0
        %711 = vmatprep.subr.mxu0 0.0
        %712 = vmatpush2.msra.mxu0 0.0
        %713 = vmatprep.subr.mxu0 0.0
        %714 = vmatpush2.msra.mxu0 0.0
        %715 = vmatprep.subr.mxu0 0.0
        %716 = vmatpush2.msra.mxu0 0.0
        %717 = vmatprep.subr.mxu0 0.0
        %718 = vmatpush2.msra.mxu0 0.0
        %719 = vmatprep.subr.mxu0 0.0
        %720 = vmatpush2.msra.mxu0 0.0
        %721 = vmatprep.subr.mxu0 0.0
        %722 = vmatpush2.msra.mxu0 0.0
        %723 = vmatprep.subr.mxu0 0.0
        %724 = vmatpush2.msra.mxu0 0.0
        %725 = vmatprep.subr.mxu0 0.0
        %726 = vmatpush2.msra.mxu0 0.0
        %727 = vmatprep.mubr.f32.mxu0 0.0
        %728 = vmatmul.mubr.f32.gmra.mxu0 %v661
        %v729 = vpop.f32.mrf.mxu0
        %v730 = vadd.f32 0.0, %v729
        %v731 = vpop.f32.mrf.mxu0
        %732 = vdwg.mxu0
        %s733 = scalar_lea.vmem %s2, 8
        %v734 = vld [vmem:[%s733] sm:$0xff]
        %736 = vset.pattern.permute.xlu0 0
        %737 = vperm.xlu0 %736, %v734
        %v738 = vpop.permute.xlu0 %737
        %v740 = vmul.f32 %v730, %v738
        %s741 = scalar_lea.vmem %s3, 8
        %v742 = vld [vmem:[%s741] sm:$0xff]
        %744 = vset.pattern.permute.xlu0 0
        %745 = vperm.xlu0 %744, %v742
        %v746 = vpop.permute.xlu0 %745
        %v748 = vadd.f32 %v740, %v746
        %v749 = vmax.f32 %v748, 0.0
        %750 = vst.msk [vmem:[#allocation2 + $0x10] sm:$0xff] %vm216, %v749
        %v751 = vld [vmem:[#allocation2] sm:$0xff]
        %v752 = vld [vmem:[#allocation2 + $0x8] sm:$0xff]
        %v753 = vld [vmem:[#allocation2 + $0x10] sm:$0xff]
        %v755 = vsel %vm216, %v751, 0
        %v758 = vsel %vm216, %v752, 0
        %v761 = vsel %vm216, %v753, 0
        %763 = vmatprep.subr.mxu0 0.0
        %764 = vmatpush1.msra.mxu0 0.0
        %765 = vmatprep.subr.mxu0 0.0
        %766 = vmatpush1.msra.mxu0 0.0
        %767 = vmatprep.subr.mxu0 0.0
        %768 = vmatpush1.msra.mxu0 0.0
        %769 = vmatprep.subr.mxu0 0.0
        %770 = vmatpush1.msra.mxu0 0.0
        %771 = vmatprep.subr.mxu0 0.0
        %772 = vmatpush1.msra.mxu0 0.0
        %773 = vmatprep.subr.mxu0 0.0
        %774 = vmatpush1.msra.mxu0 0.0
        %775 = vmatprep.subr.mxu0 0.0
        %776 = vmatpush1.msra.mxu0 0.0
        %777 = vmatprep.subr.mxu0 0.0
        %778 = vmatpush1.msra.mxu0 0.0
        %779 = vmatprep.subr.mxu0 0.0
        %780 = vmatpush1.msra.mxu0 0.0
        %781 = vmatprep.subr.mxu0 0.0
        %782 = vmatpush1.msra.mxu0 0.0
        %783 = vmatprep.subr.mxu0 0.0
        %784 = vmatpush1.msra.mxu0 0.0
        %785 = vmatprep.subr.mxu0 0.0
        %786 = vmatpush1.msra.mxu0 0.0
        %787 = vmatprep.subr.mxu0 0.0
        %788 = vmatpush1.msra.mxu0 0.0
        %789 = vmatprep.subr.mxu0 0.0
        %790 = vmatpush1.msra.mxu0 0.0
        %791 = vmatprep.subr.mxu0 0.0
        %792 = vmatpush1.msra.mxu0 %v206
        %793 = vmatprep.subr.mxu0 0.0
        %794 = vmatpush1.msra.mxu0 %v205
        %795 = vmatprep.subr.mxu0 0.0
        %796 = vmatpush2.msra.mxu0 0.0
        %797 = vmatprep.subr.mxu0 0.0
        %798 = vmatpush2.msra.mxu0 0.0
        %799 = vmatprep.subr.mxu0 0.0
        %800 = vmatpush2.msra.mxu0 0.0
        %801 = vmatprep.subr.mxu0 0.0
        %802 = vmatpush2.msra.mxu0 0.0
        %803 = vmatprep.subr.mxu0 0.0
        %804 = vmatpush2.msra.mxu0 0.0
        %805 = vmatprep.subr.mxu0 0.0
        %806 = vmatpush2.msra.mxu0 0.0
        %807 = vmatprep.subr.mxu0 0.0
        %808 = vmatpush2.msra.mxu0 0.0
        %809 = vmatprep.subr.mxu0 0.0
        %810 = vmatpush2.msra.mxu0 0.0
        %811 = vmatprep.subr.mxu0 0.0
        %812 = vmatpush2.msra.mxu0 0.0
        %813 = vmatprep.subr.mxu0 0.0
        %814 = vmatpush2.msra.mxu0 0.0
        %815 = vmatprep.subr.mxu0 0.0
        %816 = vmatpush2.msra.mxu0 0.0
        %817 = vmatprep.subr.mxu0 0.0
        %818 = vmatpush2.msra.mxu0 0.0
        %819 = vmatprep.subr.mxu0 0.0
        %820 = vmatpush2.msra.mxu0 0.0
        %821 = vmatprep.subr.mxu0 0.0
        %822 = vmatpush2.msra.mxu0 0.0
        %823 = vmatprep.subr.mxu0 0.0
        %824 = vmatpush2.msra.mxu0 0.0
        %825 = vmatprep.subr.mxu0 0.0
        %826 = vmatpush2.msra.mxu0 0.0
        %827 = vmatprep.mubr.f32.mxu0 0.0
        %828 = vmatmul.mubr.f32.gmra.mxu0 %v755
        %v829 = vpop.f32.mrf.mxu0
        %v830 = vadd.f32 0.0, %v829
        %v831 = vpop.f32.mrf.mxu0
        %832 = vmatprep.mubr.f32.mxu0 0.0
        %833 = vmatmul.mubr.f32.gmra.mxu0 %v758
        %v834 = vpop.f32.mrf.mxu0
        %v835 = vadd.f32 0.0, %v834
        %v836 = vpop.f32.mrf.mxu0
        %837 = vmatprep.mubr.f32.mxu0 0.0
        %838 = vmatmul.mubr.f32.gmra.mxu0 %v761
        %v839 = vpop.f32.mrf.mxu0
        %v840 = vadd.f32 0.0, %v839
        %v841 = vpop.f32.mrf.mxu0
        %842 = vdwg.mxu0
        %843 = vmatprep.subr.mxu0 0.0
        %844 = vmatpush1.msra.mxu0 0.0
        %845 = vmatprep.subr.mxu0 0.0
        %846 = vmatpush1.msra.mxu0 0.0
        %847 = vmatprep.subr.mxu0 0.0
        %848 = vmatpush1.msra.mxu0 0.0
        %849 = vmatprep.subr.mxu0 0.0
        %850 = vmatpush1.msra.mxu0 0.0
        %851 = vmatprep.subr.mxu0 0.0
        %852 = vmatpush1.msra.mxu0 0.0
        %853 = vmatprep.subr.mxu0 0.0
        %854 = vmatpush1.msra.mxu0 0.0
        %855 = vmatprep.subr.mxu0 0.0
        %856 = vmatpush1.msra.mxu0 0.0
        %857 = vmatprep.subr.mxu0 0.0
        %858 = vmatpush1.msra.mxu0 0.0
        %859 = vmatprep.subr.mxu0 0.0
        %860 = vmatpush1.msra.mxu0 0.0
        %861 = vmatprep.subr.mxu0 0.0
        %862 = vmatpush1.msra.mxu0 0.0
        %863 = vmatprep.subr.mxu0 0.0
        %864 = vmatpush1.msra.mxu0 0.0
        %865 = vmatprep.subr.mxu0 0.0
        %866 = vmatpush1.msra.mxu0 0.0
        %867 = vmatprep.subr.mxu0 0.0
        %868 = vmatpush1.msra.mxu0 0.0
        %869 = vmatprep.subr.mxu0 0.0
        %870 = vmatpush1.msra.mxu0 0.0
        %871 = vmatprep.subr.mxu0 0.0
        %872 = vmatpush1.msra.mxu0 %v215
        %873 = vmatprep.subr.mxu0 0.0
        %874 = vmatpush1.msra.mxu0 %v214
        %875 = vmatprep.subr.mxu0 0.0
        %876 = vmatpush2.msra.mxu0 0.0
        %877 = vmatprep.subr.mxu0 0.0
        %878 = vmatpush2.msra.mxu0 0.0
        %879 = vmatprep.subr.mxu0 0.0
        %880 = vmatpush2.msra.mxu0 0.0
        %881 = vmatprep.subr.mxu0 0.0
        %882 = vmatpush2.msra.mxu0 0.0
        %883 = vmatprep.subr.mxu0 0.0
        %884 = vmatpush2.msra.mxu0 0.0
        %885 = vmatprep.subr.mxu0 0.0
        %886 = vmatpush2.msra.mxu0 0.0
        %887 = vmatprep.subr.mxu0 0.0
        %888 = vmatpush2.msra.mxu0 0.0
        %889 = vmatprep.subr.mxu0 0.0
        %890 = vmatpush2.msra.mxu0 0.0
        %891 = vmatprep.subr.mxu0 0.0
        %892 = vmatpush2.msra.mxu0 0.0
        %893 = vmatprep.subr.mxu0 0.0
        %894 = vmatpush2.msra.mxu0 0.0
        %895 = vmatprep.subr.mxu0 0.0
        %896 = vmatpush2.msra.mxu0 0.0
        %897 = vmatprep.subr.mxu0 0.0
        %898 = vmatpush2.msra.mxu0 0.0
        %899 = vmatprep.subr.mxu0 0.0
        %900 = vmatpush2.msra.mxu0 0.0
        %901 = vmatprep.subr.mxu0 0.0
        %902 = vmatpush2.msra.mxu0 0.0
        %903 = vmatprep.subr.mxu0 0.0
        %904 = vmatpush2.msra.mxu0 0.0
        %905 = vmatprep.subr.mxu0 0.0
        %906 = vmatpush2.msra.mxu0 0.0
        %907 = vmatprep.mubr.f32.mxu0 0.0
        %908 = vmatmul.mubr.f32.gmra.mxu0 %v755
        %v909 = vpop.f32.mrf.mxu0
        %v910 = vadd.f32 0.0, %v909
        %v911 = vpop.f32.mrf.mxu0
        %912 = vmatprep.mubr.f32.mxu0 0.0
        %913 = vmatmul.mubr.f32.gmra.mxu0 %v758
        %v914 = vpop.f32.mrf.mxu0
        %v915 = vadd.f32 0.0, %v914
        %v916 = vpop.f32.mrf.mxu0
        %917 = vmatprep.mubr.f32.mxu0 0.0
        %918 = vmatmul.mubr.f32.gmra.mxu0 %v761
        %v919 = vpop.f32.mrf.mxu0
        %v920 = vadd.f32 0.0, %v919
        %v921 = vpop.f32.mrf.mxu0
        %922 = vdwg.mxu0
        %s923 = scalar_lea.vmem %s1, 16
        %v924 = vld [vmem:[%s923] sm:$0xff]
        %v926 = vsel %vm396, %v924, 0
        %928 = vmatprep.subr.mxu0 0.0
        %929 = vmatpush1.msra.mxu0 0.0
        %930 = vmatprep.subr.mxu0 0.0
        %931 = vmatpush1.msra.mxu0 0.0
        %932 = vmatprep.subr.mxu0 0.0
        %933 = vmatpush1.msra.mxu0 0.0
        %934 = vmatprep.subr.mxu0 0.0
        %935 = vmatpush1.msra.mxu0 0.0
        %936 = vmatprep.subr.mxu0 0.0
        %937 = vmatpush1.msra.mxu0 0.0
        %938 = vmatprep.subr.mxu0 0.0
        %939 = vmatpush1.msra.mxu0 0.0
        %940 = vmatprep.subr.mxu0 0.0
        %941 = vmatpush1.msra.mxu0 0.0
        %942 = vmatprep.subr.mxu0 0.0
        %943 = vmatpush1.msra.mxu0 %v920
        %944 = vmatprep.subr.mxu0 0.0
        %945 = vmatpush1.msra.mxu0 %v915
        %946 = vmatprep.subr.mxu0 0.0
        %947 = vmatpush1.msra.mxu0 %v910
        %948 = vmatprep.subr.mxu0 0.0
        %949 = vmatpush1.msra.mxu0 %v753
        %950 = vmatprep.subr.mxu0 0.0
        %951 = vmatpush1.msra.mxu0 %v752
        %952 = vmatprep.subr.mxu0 0.0
        %953 = vmatpush1.msra.mxu0 %v751
        %954 = vmatprep.subr.mxu0 0.0
        %955 = vmatpush1.msra.mxu0 %v840
        %956 = vmatprep.subr.mxu0 0.0
        %957 = vmatpush1.msra.mxu0 %v835
        %958 = vmatprep.subr.mxu0 0.0
        %959 = vmatpush1.msra.mxu0 %v830
        %960 = vmatprep.subr.mxu0 0.0
        %961 = vmatpush2.msra.mxu0 0.0
        %962 = vmatprep.subr.mxu0 0.0
        %963 = vmatpush2.msra.mxu0 0.0
        %964 = vmatprep.subr.mxu0 0.0
        %965 = vmatpush2.msra.mxu0 0.0
        %966 = vmatprep.subr.mxu0 0.0
        %967 = vmatpush2.msra.mxu0 0.0
        %968 = vmatprep.subr.mxu0 0.0
        %969 = vmatpush2.msra.mxu0 0.0
        %970 = vmatprep.subr.mxu0 0.0
        %971 = vmatpush2.msra.mxu0 0.0
        %972 = vmatprep.subr.mxu0 0.0
        %973 = vmatpush2.msra.mxu0 0.0
        %974 = vmatprep.subr.mxu0 0.0
        %975 = vmatpush2.msra.mxu0 0.0
        %976 = vmatprep.subr.mxu0 0.0
        %977 = vmatpush2.msra.mxu0 0.0
        %978 = vmatprep.subr.mxu0 0.0
        %979 = vmatpush2.msra.mxu0 0.0
        %980 = vmatprep.subr.mxu0 0.0
        %981 = vmatpush2.msra.mxu0 0.0
        %982 = vmatprep.subr.mxu0 0.0
        %983 = vmatpush2.msra.mxu0 0.0
        %984 = vmatprep.subr.mxu0 0.0
        %985 = vmatpush2.msra.mxu0 0.0
        %986 = vmatprep.subr.mxu0 0.0
        %987 = vmatpush2.msra.mxu0 0.0
        %988 = vmatprep.subr.mxu0 0.0
        %989 = vmatpush2.msra.mxu0 0.0
        %990 = vmatprep.subr.mxu0 0.0
        %991 = vmatpush2.msra.mxu0 0.0
        %992 = vmatprep.mubr.f32.mxu0 0.0
        %993 = vmatmul.mubr.f32.gmra.mxu0 %v926
        %v994 = vpop.f32.mrf.mxu0
        %v995 = vadd.f32 0.0, %v994
        %v996 = vpop.f32.mrf.mxu0
        %997 = vdwg.mxu0
        %s998 = scalar_lea.vmem %s2, 16
        %v999 = vld [vmem:[%s998] sm:$0xff]
        %1001 = vset.pattern.permute.xlu0 0
        %1002 = vperm.xlu0 %1001, %v999
        %v1003 = vpop.permute.xlu0 %1002
        %v1005 = vmul.f32 %v995, %v1003
        %s1006 = scalar_lea.vmem %s3, 16
        %v1007 = vld [vmem:[%s1006] sm:$0xff]
        %1009 = vset.pattern.permute.xlu0 0
        %1010 = vperm.xlu0 %1009, %v1007
        %v1011 = vpop.permute.xlu0 %1010
        %v1013 = vadd.f32 %v1005, %v1011
        %v1014 = vmax.f32 %v1013, 0.0
        %1015 = vst.msk [vmem:[%s188] sm:$0xff] %vm216, %v1014
        %s1016 = sand.u32 %s115, 1
        %s1017 = scalar_lea.sflag [#allocation4], %s1016
        %s1018 = sand.u32 %s115, 1
        %s1019 = smul.addr %s1018, 8
        %s1020 = scalar_lea.vmem [#allocation3], %s1019
        // Predicated region
        $region37: #{temporal_dense_conv_layer.1} parent=35 // pred_check
          %p1021 = pneg %p125
        $region38: #{temporal_dense_conv_layer.1} parent=35 // pred_check_branch
          %1023 = sbr.rel (%p1021) target = $region40
        $region39: #{temporal_dense_conv_layer.1} parent=35 // pred_region
          %s1025 = ssub.s32 128, 128
          %1026 = vsyncadd %s1017, %s1025
          %s1027 = smul.addr %s18, 128
          %s1028 = scalar_lea.hbm %s4, %s1027
          %s1030 = sshll.u32 %s1020, 4
          %s1031 = int_to_ptr.vmem [resolvable:$true] %s1030
          %1033 = dma.vmem_to_hbm [thread:$0]  %s1031, 128, %s1028, %s1017
        $region40: #{temporal_dense_conv_layer.1} parent=35 // pred_fallthru
          _
      $region36: #{temporal_dense_conv_layer.1} parent=5 // pred_fallthru
        _
      %p1034 = scmp.le.s32.totalorder 2, %s13
      // Predicated region
      $region41: #{temporal_dense_conv_layer.1} parent=5 // pred_check
        %p1035 = pneg %p1034
      $region42: #{temporal_dense_conv_layer.1} parent=5 // pred_check_branch
        %1037 = sbr.rel (%p1035) target = $region44
      $region43: #{temporal_dense_conv_layer.1} parent=5 // pred_region
        %s1038 = ssub.s32 %s13, 2
        // Predicated region
        $region45: #{temporal_dense_conv_layer.1} parent=43 // pred_check
          %p1039 = pneg %p131
        $region46: #{temporal_dense_conv_layer.1} parent=43 // pred_check_branch
          %1041 = sbr.rel (%p1039) target = $region48
        $region47: #{temporal_dense_conv_layer.1} parent=43 // pred_region
          %s1042 = sand.u32 %s116, 1
          %s1043 = scalar_lea.sflag [#allocation4], %s1042
          %s1044 = sand.u32 %s116, 1
          %s1045 = smul.addr %s1044, 8
          %s1046 = scalar_lea.vmem [#allocation3], %s1045
          %1047 = dma.done %s1043, 128
        $region48: #{temporal_dense_conv_layer.1} parent=43 // pred_fallthru
          _
      $region44: #{temporal_dense_conv_layer.1} parent=5 // pred_fallthru
        _
    $region6: #{temporal_dense_conv_layer.1} parent=1 // loop_footer
      %s17 = sadd.s32 1, %s13
    $region7: #{temporal_dense_conv_layer.1} parent=1 // loop_footer_branch
      %12 = sbr.rel target = $region3
    $region8: #{temporal_dense_conv_layer.1} parent=1 // loop_exit
      _
    %1048 = vsyncpa [#allocation4], 1
    %s1049 = scalar_lea.sflag [#allocation4], 1
    %1050 = vsyncpa %s1049, 1

</llo_original>
